<compile_context>
chip_gen: v7x
topology: tpu7x:2x2x1
jax: 0.10.0
libtpu: 0.0.40
codegen_flags: <defaults>
</compile_context>

<pallas_src>
import functools

import jax
import jax.numpy as jnp
from jax import lax
from jax.experimental import pallas as pl
from jax.experimental.pallas import tpu as pltpu


_VMEM_LIMIT_BYTES = 48 * 1024 * 1024   # fits v7x's 64 MiB physical VMEM with headroom


# ----------------------------------------------------------------------------
# Small helpers
# ----------------------------------------------------------------------------
def _round_up(n, m):
    return ((n + m - 1) // m) * m


def _pad_to(a, shape):
    pads = [(0, t - s) for s, t in zip(a.shape, shape)]
    return jnp.pad(a, pads)


def _row_tile(n, pref=256):
    """Tile for a sublane dim: full dim, or a multiple of 16 that divides n."""
    if n <= pref:
        return n
    t = pref - pref % 16
    while t >= 16:
        if n % t == 0:
            return t
        t -= 16
    return n


def _lane_tile(n, pref=512):
    """Tile for a lane dim: full dim, or a multiple of 128 that divides n."""
    if n <= pref:
        return n
    t = pref - pref % 128
    while t >= 128:
        if n % t == 0:
            return t
        t -= 128
    return n


# ----------------------------------------------------------------------------
# Pallas kernels
# ----------------------------------------------------------------------------
def _linear_kernel(x_ref, w_ref, o_ref):
    """Y = X @ W (row-tiled, lane-dense padded output)."""
    o_ref[...] = jnp.dot(x_ref[...], w_ref[...],
                         preferred_element_type=jnp.float32)


def pallas_linear(x, w):
    N, K = x.shape
    P = w.shape[1]
    tm = _row_tile(N)
    return pl.pallas_call(
        _linear_kernel,
        grid=(N // tm,),
        in_specs=[pl.BlockSpec((tm, K), lambda i: (i, 0)),
                  pl.BlockSpec((K, P), lambda i: (0, 0))],
        out_specs=pl.BlockSpec((tm, P), lambda i: (i, 0)),
        out_shape=jax.ShapeDtypeStruct((N, P), jnp.float32),
        compiler_params=pltpu.CompilerParams(
            dimension_semantics=("parallel",),
            vmem_limit_bytes=_VMEM_LIMIT_BYTES),
    )(x, w)


def _gat_attn_kernel(xwq_ref, xwk_ref, asrc_ref, adstT_ref, mask_ref,
                     scale_ref, shift_ref, o_ref,
                     edst_scr, m_scr, l_scr, acc_scr, *, heads, fh, hfp):
    """Flash-style GAT attention + folded GAT-bias/BatchNorm1 + ReLU.

    Grid = (dst tiles [parallel], src tiles [arbitrary]); online softmax
    scratch (m, l, acc) resident per dst tile; one lane-dense [TQ, HFP] store.
    """
    k = pl.program_id(1)

    @pl.when(k == 0)
    def _init():
        # e_dst for ALL heads with one MXU contraction (adst_T is block-expanded
        # and pre-transposed in the wrapper).
        edst_scr[...] = jnp.dot(xwq_ref[...], adstT_ref[...],
                                preferred_element_type=jnp.float32)
        m_scr[...] = jnp.full(m_scr.shape, -1e30, jnp.float32)
        l_scr[...] = jnp.zeros(l_scr.shape, jnp.float32)
        acc_scr[...] = jnp.zeros(acc_scr.shape, jnp.float32)

    xwk = xwk_ref[...]                                                # [TK, HFP]
    # Source logits for ALL heads with one contraction -> [8, TK].
    e_src = lax.dot_general(asrc_ref[...], xwk, (((1,), (1,)), ((), ())),
                            preferred_element_type=jnp.float32)
    mask = mask_ref[...].astype(jnp.float32)                          # [TQ, TK]

    for h in range(heads):                                            # static unroll
        lo, hi = h * fh, (h + 1) * fh
        s = edst_scr[:, h:h + 1] + e_src[h:h + 1, :]                  # [TQ, TK]
        s = jnp.maximum(s, 0.2 * s)                                   # LeakyReLU(0.2)
        s = s + mask                                                  # additive mask
        m_prev = m_scr[:, h:h + 1]
        m_new = jnp.maximum(m_prev, jnp.max(s, axis=-1, keepdims=True))
        corr = jnp.exp(m_prev - m_new)
        p = jnp.exp(s - m_new)
        l_scr[:, h:h + 1] = corr * l_scr[:, h:h + 1] + jnp.sum(p, axis=-1,
                                                               keepdims=True)
        m_scr[:, h:h + 1] = m_new
        # bf16 MXU operands, f32 accumulation, static lane slice of xw.
        contrib = jnp.dot(p.astype(jnp.bfloat16),
                          xwk[:, lo:hi].astype(jnp.bfloat16),
                          preferred_element_type=jnp.float32)
        acc_scr[:, lo:hi] = corr * acc_scr[:, lo:hi] + contrib

    @pl.when(k == pl.num_programs(1) - 1)
    def _fin():
        pieces = []
        for h in range(heads):
            lo, hi = h * fh, (h + 1) * fh
            inv_l = pl.reciprocal(l_scr[:, h:h + 1], approx=True)     # EUP slot
            pieces.append(acc_scr[:, lo:hi] * inv_l)
        pad = hfp - heads * fh
        if pad:
            pieces.append(jnp.zeros((o_ref.shape[0], pad), jnp.float32))
        y = jnp.concatenate(pieces, axis=-1)
        y = y * scale_ref[...] + shift_ref[...]     # folded GAT bias + BatchNorm1
        o_ref[...] = jnp.maximum(y, 0.0)            # ReLU, single lane-dense store


def pallas_gat_attention(xw, asrc_bd, adst_T, mask_bias, scale, shift,
                         *, heads, fh):
    N, hfp = xw.shape
    tq = _row_tile(N)
    tk = _lane_tile(N)
    kern = functools.partial(_gat_attn_kernel, heads=heads, fh=fh, hfp=hfp)
    return pl.pallas_call(
        kern,
        grid=(N // tq, N // tk),
        in_specs=[
            pl.BlockSpec((tq, hfp), lambda i, k: (i, 0)),    # xw (dst rows)
            pl.BlockSpec((tk, hfp), lambda i, k: (k, 0)),    # xw (src rows)
            pl.BlockSpec((8, hfp), lambda i, k: (0, 0)),     # att_src (block-exp)
            pl.BlockSpec((hfp, 128), lambda i, k: (0, 0)),   # att_dst^T (block-exp)
            pl.BlockSpec((tq, tk), lambda i, k: (i, k)),     # additive mask (bf16)
            pl.BlockSpec((1, hfp), lambda i, k: (0, 0)),     # scale
            pl.BlockSpec((1, hfp), lambda i, k: (0, 0)),     # shift
        ],
        out_specs=pl.BlockSpec((tq, hfp), lambda i, k: (i, 0)),
        out_shape=jax.ShapeDtypeStruct((N, hfp), jnp.float32),
        scratch_shapes=[pltpu.VMEM((tq, 128), jnp.float32),  # e_dst (all heads)
                        pltpu.VMEM((tq, 128), jnp.float32),  # m (col per head)
                        pltpu.VMEM((tq, 128), jnp.float32),  # l (col per head)
                        pltpu.VMEM((tq, hfp), jnp.float32)], # acc
        compiler_params=pltpu.CompilerParams(
            dimension_semantics=("parallel", "arbitrary"),
            vmem_limit_bytes=_VMEM_LIMIT_BYTES),
    )(xw, xw, asrc_bd, adst_T, mask_bias, scale, shift)


def _gcn_agg_kernel(a_ref, xw_ref, b_ref, scale_ref, shift_ref, o_ref, acc_scr,
                    *, channels, fh, relu_before_affine):
    """C-channel GCN aggregation + concat + folded BatchNorm2 + ReLU.

    Grid = (dst tiles [parallel], src tiles [arbitrary]); A streamed in
    (C, TM, TK) bf16 blocks; accumulator initialized with the bias.
    """
    k = pl.program_id(1)

    @pl.when(k == 0)
    def _init():
        acc_scr[...] = jnp.broadcast_to(b_ref[...], acc_scr.shape)

    xw = xw_ref[...]                                                  # [TK, CFP]
    for c in range(channels):                                         # static unroll
        lo, hi = c * fh, (c + 1) * fh
        contrib = jnp.dot(a_ref[c],                                   # bf16 A block
                          xw[:, lo:hi].astype(jnp.bfloat16),
                          preferred_element_type=jnp.float32)
        acc_scr[:, lo:hi] = acc_scr[:, lo:hi] + contrib

    @pl.when(k == pl.num_programs(1) - 1)
    def _fin():
        acc = acc_scr[...]
        if relu_before_affine:    # x = BN2(relu(concat GCN3))
            y = jnp.maximum(acc, 0.0) * scale_ref[...] + shift_ref[...]
        else:                     # x = relu(BN2(concat GCN1))
            y = jnp.maximum(acc * scale_ref[...] + shift_ref[...], 0.0)
        o_ref[...] = y            # single lane-dense store


def pallas_gcn_agg(A, xw, b, scale, shift, *, channels, fh, relu_before_affine):
    C, N, _ = A.shape
    cfp = xw.shape[1]
    tm = _row_tile(N)
    tk = _lane_tile(N)
    kern = functools.partial(_gcn_agg_kernel, channels=channels, fh=fh,
                             relu_before_affine=relu_before_affine)
    return pl.pallas_call(
        kern,
        grid=(N // tm, N // tk),
        in_specs=[
            pl.BlockSpec((C, tm, tk), lambda i, k: (0, i, k)),   # A (bf16)
            pl.BlockSpec((tk, cfp), lambda i, k: (k, 0)),        # xw (src rows)
            pl.BlockSpec((1, cfp), lambda i, k: (0, 0)),         # bias
            pl.BlockSpec((1, cfp), lambda i, k: (0, 0)),         # scale
            pl.BlockSpec((1, cfp), lambda i, k: (0, 0)),         # shift
        ],
        out_specs=pl.BlockSpec((tm, cfp), lambda i, k: (i, 0)),
        out_shape=jax.ShapeDtypeStruct((N, cfp), jnp.float32),
        scratch_shapes=[pltpu.VMEM((tm, cfp), jnp.float32)],
        compiler_params=pltpu.CompilerParams(
            dimension_semantics=("parallel", "arbitrary"),
            vmem_limit_bytes=_VMEM_LIMIT_BYTES),
    )(A, xw, b, scale, shift)


def _mlp_kernel(e_ref, w1_ref, b1_ref, w2_ref, b2_ref, w3_ref, b3_ref, o_ref):
    h = jnp.dot(e_ref[...], w1_ref[...],
                preferred_element_type=jnp.float32) + b1_ref[...]
    h = jnp.maximum(h, 0.0)
    h = jnp.dot(h, w2_ref[...],
                preferred_element_type=jnp.float32) + b2_ref[...]
    h = jnp.maximum(h, 0.0)
    o_ref[...] = jnp.dot(h, w3_ref[...],
                         preferred_element_type=jnp.float32) + b3_ref[...]


def pallas_link_mlp(e, w1, b1, w2, b2, w3, b3):
    R, F = e.shape
    hlp = w1.shape[1]
    outp = w3.shape[1]
    te = _row_tile(R)
    return pl.pallas_call(
        _mlp_kernel,
        grid=(R // te,),
        in_specs=[pl.BlockSpec((te, F), lambda i: (i, 0)),
                  pl.BlockSpec((F, hlp), lambda i: (0, 0)),
                  pl.BlockSpec((1, hlp), lambda i: (0, 0)),
                  pl.BlockSpec((hlp, hlp), lambda i: (0, 0)),
                  pl.BlockSpec((1, hlp), lambda i: (0, 0)),
                  pl.BlockSpec((hlp, outp), lambda i: (0, 0)),
                  pl.BlockSpec((1, outp), lambda i: (0, 0))],
        out_specs=pl.BlockSpec((te, outp), lambda i: (i, 0)),
        out_shape=jax.ShapeDtypeStruct((R, outp), jnp.float32),
        compiler_params=pltpu.CompilerParams(
            dimension_semantics=("parallel",),
            vmem_limit_bytes=_VMEM_LIMIT_BYTES),
    )(e, w1, b1, w2, b2, w3, b3)


# ----------------------------------------------------------------------------
# Glue: dense graph operators, parameters
# ----------------------------------------------------------------------------
def _block_expand(att):
    """[H, Fh] -> [H, H*Fh]: row h holds att[h] in lane block h, zeros elsewhere."""
    H, Fh = att.shape
    eye = jnp.eye(H, dtype=att.dtype)
    return (eye[:, :, None] * att[:, None, :]).reshape(H, H * Fh)


def dense_gcn_adjacency_multi(edge_index, edge_attr, num_nodes):
    """All C GCNConv-normalized dense adjacencies [C,N,N] with one fused scatter."""
    C = edge_attr.shape[1]
    loops = jnp.arange(num_nodes, dtype=edge_index.dtype)
    src = jnp.concatenate([edge_index[0], loops])
    dst = jnp.concatenate([edge_index[1], loops])
    w = jnp.concatenate(
        [edge_attr, jnp.ones((num_nodes, C), edge_attr.dtype)], axis=0)   # [E+N, C]
    deg = jnp.zeros((num_nodes, C), jnp.float32).at[dst].add(w)           # [N, C]
    dinv = jnp.where(deg > 0.0,
                     lax.rsqrt(jnp.where(deg > 0.0, deg, 1.0)), 0.0)
    norm = dinv[src] * w * dinv[dst]                                      # [E+N, C]
    A = jnp.zeros((C, num_nodes, num_nodes), jnp.float32)
    return A.at[:, dst, src].add(norm.T)


def gat_mask_bias(edge_index, num_nodes):
    """Additive attention bias: 0 where an edge (incl. self loop) exists, else -1e30."""
    src, dst = edge_index[0], edge_index[1]
    M = jnp.zeros((num_nodes, num_nodes), jnp.float32).at[dst, src].set(1.0)
    M = jnp.maximum(M, jnp.eye(num_nodes, dtype=jnp.float32))
    return (M - 1.0) * 1e30


def init_params(key, input_dim, hidden_dim, hid_like_dim, heads, C, out_dim):
    ks = jax.random.split(key, 32)

    def nrm(k, shape, s=0.1):
        return (s * jax.random.normal(k, shape)).astype(jnp.float32)

    p = {}
    # GATConv(input_dim, hidden_dim, heads)
    p["gat_w"] = nrm(ks[0], (input_dim, heads * hidden_dim))
    p["gat_att_src"] = nrm(ks[1], (heads, 1, hidden_dim))
    p["gat_att_dst"] = nrm(ks[2], (heads, 1, hidden_dim))
    p["gat_b"] = nrm(ks[3], (heads * hidden_dim,))
    # conv_list : C x GCNConv(heads*hidden, hidden)
    p["gcn1_w"] = nrm(ks[4], (C, heads * hidden_dim, hidden_dim))
    p["gcn1_b"] = nrm(ks[5], (C, 1, hidden_dim))
    # conv_list_3 : C x GCNConv(C*hidden, hidden)
    p["gcn3_w"] = nrm(ks[6], (C, C * hidden_dim, hidden_dim))
    p["gcn3_b"] = nrm(ks[7], (C, 1, hidden_dim))
    # BatchNorm1d (eval mode running stats)
    d1 = heads * hidden_dim
    d2 = C * hidden_dim
    p["bn1_gamma"] = 1.0 + nrm(ks[8], (d1,))
    p["bn1_beta"] = nrm(ks[9], (d1,))
    p["bn1_mean"] = nrm(ks[10], (d1,))
    p["bn1_var"] = 0.5 + jax.random.uniform(ks[11], (d1,), dtype=jnp.float32)
    p["bn2_gamma"] = 1.0 + nrm(ks[12], (d2,))
    p["bn2_beta"] = nrm(ks[13], (d2,))
    p["bn2_mean"] = nrm(ks[14], (d2,))
    p["bn2_var"] = 0.5 + jax.random.uniform(ks[15], (d2,), dtype=jnp.float32)
    # link likelihood MLP
    p["lk0_w"] = nrm(ks[16], (2 * d2, hid_like_dim))
    p["lk0_b"] = nrm(ks[17], (hid_like_dim,))
    p["lk1_w"] = nrm(ks[18], (hid_like_dim, hid_like_dim))
    p["lk1_b"] = nrm(ks[19], (hid_like_dim,))
    p["lk2_w"] = nrm(ks[20], (hid_like_dim, out_dim))
    p["lk2_b"] = nrm(ks[21], (out_dim,))
    return p


# ----------------------------------------------------------------------------
# Forward pass
# ----------------------------------------------------------------------------
def graph_hic_forward(params, x, edge_index, edge_attr, edge_index_test,
                      *, hidden_dim, heads, num_edge_attr):
    eps = 1e-5
    N = x.shape[0]
    C = num_edge_attr
    Fh = hidden_dim
    D1 = heads * Fh                      # real GAT output width
    D2 = C * Fh                          # real GCN concat width
    HFP = _round_up(D1, 128)             # lane-dense padded widths
    CFP = _round_up(D2, 128)

    # Fold eval-mode BatchNorm (and the GAT / GCN biases) into per-feature affines.
    scale1 = params["bn1_gamma"] * lax.rsqrt(params["bn1_var"] + eps)
    shift1 = (params["gat_b"] - params["bn1_mean"]) * scale1 + params["bn1_beta"]
    scale2 = params["bn2_gamma"] * lax.rsqrt(params["bn2_var"] + eps)
    shift2 = params["bn2_beta"] - params["bn2_mean"] * scale2

    scale1_p = _pad_to(scale1.reshape(1, D1), (1, HFP))
    shift1_p = _pad_to(shift1.reshape(1, D1), (1, HFP))
    scale2_p = _pad_to(scale2.reshape(1, D2), (1, CFP))
    shift2_p = _pad_to(shift2.reshape(1, D2), (1, CFP))

    # ---- GATConv: wide projection kernel + flash-style attention kernel ----
    gat_w_p = _pad_to(params["gat_w"], (x.shape[1], HFP))
    xw = pallas_linear(x, gat_w_p)                                    # [N, HFP]

    asrc_bd = _pad_to(_block_expand(params["gat_att_src"].reshape(heads, Fh)),
                      (8, HFP))                                       # [8, HFP]
    adst_T = _pad_to(_block_expand(params["gat_att_dst"].reshape(heads, Fh)).T,
                     (HFP, 128))                                      # [HFP, 128]
    mask_bias = gat_mask_bias(edge_index, N).astype(jnp.bfloat16)     # [N, N] bf16

    x1 = pallas_gat_attention(xw, asrc_bd, adst_T, mask_bias,
                              scale1_p, shift1_p, heads=heads, fh=Fh)  # [N, HFP]

    # ---- dense normalized adjacencies (bf16, one fused scatter) -------------
    A = dense_gcn_adjacency_multi(edge_index, edge_attr, N).astype(jnp.bfloat16)

    # ---- conv_list (C x GCN) + BN2 + ReLU ------------------------------------
    w1_all = params["gcn1_w"].transpose(1, 0, 2).reshape(D1, D2)
    b1_all = params["gcn1_b"].reshape(1, D2)
    xw1 = pallas_linear(x1, _pad_to(w1_all, (HFP, CFP)))              # [N, CFP]
    x2 = pallas_gcn_agg(A, xw1, _pad_to(b1_all, (1, CFP)),
                        scale2_p, shift2_p,
                        channels=C, fh=Fh, relu_before_affine=False)

    # TODO(synk): dropout_edge(p=0.1, force_undirected=True) skipped (identity),
    #             so the same adjacency A is reused for conv_list_3.

    # ---- conv_list_3 -> ReLU -> BN2 -> Dropout(identity) ---------------------
    w3_all = params["gcn3_w"].transpose(1, 0, 2).reshape(D2, D2)
    b3_all = params["gcn3_b"].reshape(1, D2)
    xw3 = pallas_linear(x2, _pad_to(w3_all, (CFP, CFP)))              # [N, CFP]
    x3 = pallas_gcn_agg(A, xw3, _pad_to(b3_all, (1, CFP)),
                        scale2_p, shift2_p,
                        channels=C, fh=Fh, relu_before_affine=True)

    # ---- predict_links -------------------------------------------------------
    # TODO(synk): row gather + concat stays in XLA; fusing it into the MLP
    #             kernel (scalar-prefetch gather) would avoid the [2*Et, 2*CFP]
    #             HBM round-trip for very large test-edge sets.
    src, dst = edge_index_test[0], edge_index_test[1]
    e_fwd = jnp.concatenate([x3[src], x3[dst]], axis=-1)              # [Et, 2*CFP]
    e_bwd = jnp.concatenate([x3[dst], x3[src]], axis=-1)
    both = jnp.concatenate([e_fwd, e_bwd], axis=0)                    # [2*Et, 2*CFP]

    HL = params["lk0_w"].shape[1]
    OUT = params["lk2_w"].shape[1]
    HLP = _round_up(HL, 128)
    OUTP = _round_up(OUT, 128)

    w1m = jnp.zeros((2 * CFP, HLP), jnp.float32)
    w1m = w1m.at[:D2, :HL].set(params["lk0_w"][:D2])
    w1m = w1m.at[CFP:CFP + D2, :HL].set(params["lk0_w"][D2:])
    b1m = _pad_to(params["lk0_b"].reshape(1, HL), (1, HLP))
    w2m = _pad_to(params["lk1_w"], (HLP, HLP))
    b2m = _pad_to(params["lk1_b"].reshape(1, HL), (1, HLP))
    w3m = _pad_to(params["lk2_w"], (HLP, OUTP))
    b3m = _pad_to(params["lk2_b"].reshape(1, OUT), (1, OUTP))

    out_p = pallas_link_mlp(both, w1m, b1m, w2m, b2m, w3m, b3m)       # [2*Et, OUTP]
    out = out_p[:, :OUT]
    Et = src.shape[0]
    return 0.5 * (out[:Et] + out[Et:])                                # [Et, out_dim]


# ----------------------------------------------------------------------------
# Example run
# ----------------------------------------------------------------------------
if __name__ == "__main__":
    # small-but-consistent module hyper-parameters
    INPUT_DIM = 32
    HIDDEN_DIM = 16
    HID_LIKE_DIM = 32
    HEADS = 4
    NUM_EDGE_ATTR = 5
    OUTPUT_DIM = 4

    N_NODES = 16
    N_EDGES = 40
    N_TEST_EDGES = 12

    root = jax.random.PRNGKey(0)
    k_par, k_x, k_edge, k_attr = jax.random.split(root, 4)

    params = init_params(k_par, INPUT_DIM, HIDDEN_DIM, HID_LIKE_DIM,
                         HEADS, NUM_EDGE_ATTR, OUTPUT_DIM)

    x = jax.random.normal(k_x, (N_NODES, INPUT_DIM), dtype=jnp.float32)

    # deterministic duplicate-free off-diagonal edges
    all_pairs = jnp.array([(i, j) for i in range(N_NODES)
                           for j in range(N_NODES) if i != j], dtype=jnp.int32)
    perm = jax.random.permutation(k_edge, all_pairs.shape[0])
    train_pairs = all_pairs[perm[:N_EDGES]]
    test_pairs = all_pairs[perm[N_EDGES:N_EDGES + N_TEST_EDGES]]
    edge_index = train_pairs.T.astype(jnp.int32)            # [2, E]
    edge_index_test = test_pairs.T.astype(jnp.int32)        # [2, Et]
    edge_attr = jax.random.uniform(k_attr, (N_EDGES, NUM_EDGE_ATTR),
                                   minval=0.1, maxval=1.0, dtype=jnp.float32)

    out = graph_hic_forward(params, x, edge_index, edge_attr, edge_index_test,
                            hidden_dim=HIDDEN_DIM, heads=HEADS,
                            num_edge_attr=NUM_EDGE_ATTR)
    out = jax.block_until_ready(out)
    assert out.shape == (N_TEST_EDGES, OUTPUT_DIM)
    assert bool(jnp.all(jnp.isfinite(out)))
    print("KERNEL_OK")
</pallas_src>

<mosaic_0001>
module attributes {stable_mosaic.version = 11 : i64} {
  func.func @_linear_kernel(%arg0: i32, %arg1: memref<16x32xf32, #tpu.memory_space<vmem>>, %arg2: memref<32x128xf32, #tpu.memory_space<vmem>>, %arg3: memref<16x128xf32, #tpu.memory_space<vmem>>) attributes {dimension_semantics = [#tpu.dimension_semantics<parallel>], iteration_bounds = array<i64: 1>, scalar_prefetch = 0 : i64, scratch_operands = 0 : i64, tpu.core_type = #tpu.core_type<tc>, window_params = [{transform_indices = @transform_0, window_bounds = array<i64: 16, 32>}, {pipeline_mode = #tpu.pipeline_mode<synchronous>, transform_indices = @transform_1, window_bounds = array<i64: 32, 128>}, {transform_indices = @transform_2, window_bounds = array<i64: 16, 128>}]} {
    %c0 = arith.constant 0 : index
    %c0_0 = arith.constant 0 : index
    %0 = vector.load %arg1[%c0, %c0_0] : memref<16x32xf32, #tpu.memory_space<vmem>>, vector<16x32xf32>
    %c0_1 = arith.constant 0 : index
    %c0_2 = arith.constant 0 : index
    %1 = vector.load %arg2[%c0_1, %c0_2] : memref<32x128xf32, #tpu.memory_space<vmem>>, vector<32x128xf32>
    %cst = arith.constant dense<0.000000e+00> : vector<16x128xf32>
    %2 = tpu.matmul %0, %1, %cst {dimension_numbers = #tpu.dot_dimension_numbers<[1], [0], [0], [1], [0, 0, 1, 1], [], []>} : vector<16x32xf32>, vector<32x128xf32>, vector<16x128xf32> -> vector<16x128xf32>
    %c0_3 = arith.constant 0 : index
    %c0_4 = arith.constant 0 : index
    %3 = vector.load %arg3[%c0_3, %c0_4] : memref<16x128xf32, #tpu.memory_space<vmem>>, vector<16x128xf32>
    tpu.vector_store %arg3[%c0_3, %c0_4], %2 {strides = array<i32>} : memref<16x128xf32, #tpu.memory_space<vmem>>, vector<16x128xf32>,
    return
  }
  func.func @transform_0(%arg0: i32) -> (i32, i32) {
    %c0_i32 = arith.constant 0 : i32
    %c0_i32_0 = arith.constant 0 : i32
    return %arg0, %c0_i32 : i32, i32
  }
  func.func @transform_1(%arg0: i32) -> (i32, i32) {
    %c0_i32 = arith.constant 0 : i32
    %c0_i32_0 = arith.constant 0 : i32
    %c0_i32_1 = arith.constant 0 : i32
    return %c0_i32, %c0_i32_0 : i32, i32
  }
  func.func @transform_2(%arg0: i32) -> (i32, i32) {
    %c0_i32 = arith.constant 0 : i32
    %c0_i32_0 = arith.constant 0 : i32
    return %arg0, %c0_i32 : i32, i32
  }
}

</mosaic_0001>

<llo_original>
// kernel: tpu_custom_call.1
$region0: #{tpu_custom_call.1}
  #allocation0 [shape = 'u32[]', space=smem, size = 0x4, offset = 0x4, fixed_abs, tag = 'smem constant byte address 0x4 - core index']
  #allocation1 [shape = 'u32[144,128]{1,0:T(1,128)}', space=vmem, size = 0x12000, scoped, tag = 'internal scratch']
  %s0 = inlined_call_operand.hbm [shape: f32[16,32], index: 0, kind: input, shape index: {}]
  %s1 = inlined_call_operand.hbm [shape: f32[32,128], index: 1, kind: input, shape index: {}]
  %s2 = inlined_call_operand.hbm [shape: f32[16,128], index: 2, kind: output, shape index: {}]
  %s3 = sld [smem:[#allocation0]]
  $region26: #{tpu_custom_call.1} parent=0
    _
  %s5 = ssub.s32 1, %s3
  %s6 = scalar_select 0, %s5, %s3
  $region1: #{tpu_custom_call.1} parent=0
    #allocation2 [shape = 'u8[8192]{0}', space=vmem, size = 0x2000, scoped, tag = 'input window, operand 0, single buffered']
    #allocation3 [shape = 's32[1]{0}', space=sflag, size = 0x4, scoped, tag = 'scoped memory for tpu_custom_call.1']
    #allocation4 [shape = 's32[1]{0}', space=sflag, size = 0x4, scoped, tag = 'scoped memory for tpu_custom_call.1']
    #allocation5 [shape = 'u8[16384]{0}', space=vmem, size = 0x4000, scoped, tag = 'input window, operand 1, single buffered']
    #allocation6 [shape = 's32[1]{0}', space=sflag, size = 0x4, scoped, tag = 'scoped memory for tpu_custom_call.1']
    #allocation7 [shape = 'u8[8192]{0}', space=vmem, size = 0x2000, scoped, tag = 'output window, operand 0, single buffered']
    %7 = vsyncpa [#allocation3], 0
    %8 = vsyncpa [#allocation6], 0
    %9 = vsyncpa [#allocation4], 0
    // Predicated region
    $region2: #{tpu_custom_call.1} parent=1 // pred_check
      _
    $region3: #{tpu_custom_call.1} parent=1 // pred_check_branch
      %11 = sbr.rel (0) target = $region5
    $region4: #{tpu_custom_call.1} parent=1 // pred_region
      %s13 = ssub.s32 256, 256
      %14 = vsyncadd [#allocation3], %s13
      %s15 = sshll.u32 [#allocation2], 4
      %s16 = int_to_ptr.vmem [resolvable:$true] %s15
      %21 = dma.hbm_to_vmem [thread:$0]  %s0, 256, %s16, [#allocation3], 128, 128, 8
    $region5: #{tpu_custom_call.1} parent=1 // pred_fallthru
      _
    // Predicated region
    $region6: #{tpu_custom_call.1} parent=1 // pred_check
      _
    $region7: #{tpu_custom_call.1} parent=1 // pred_check_branch
      %23 = sbr.rel (0) target = $region9
    $region8: #{tpu_custom_call.1} parent=1 // pred_region
      %s25 = ssub.s32 512, 512
      %26 = vsyncadd [#allocation6], %s25
      %s27 = sshll.u32 [#allocation5], 4
      %s28 = int_to_ptr.vmem [resolvable:$true] %s27
      %33 = dma.hbm_to_vmem [thread:$0]  %s1, 512, %s28, [#allocation6], 128, 128, 8
    $region9: #{tpu_custom_call.1} parent=1 // pred_fallthru
      _
    // Predicated region
    $region10: #{tpu_custom_call.1} parent=1 // pred_check
      _
    $region11: #{tpu_custom_call.1} parent=1 // pred_check_branch
      %35 = sbr.rel (0) target = $region13
    $region12: #{tpu_custom_call.1} parent=1 // pred_region
      %36 = dma.done [#allocation3], 256
    $region13: #{tpu_custom_call.1} parent=1 // pred_fallthru
      _
    // Predicated region
    $region14: #{tpu_custom_call.1} parent=1 // pred_check
      _
    $region15: #{tpu_custom_call.1} parent=1 // pred_check_branch
      %38 = sbr.rel (0) target = $region17
    $region16: #{tpu_custom_call.1} parent=1 // pred_region
      %39 = dma.done [#allocation6], 512
    $region17: #{tpu_custom_call.1} parent=1 // pred_fallthru
      _
    %v40 = vld [vmem:[#allocation2] sm:$0xff]
    %v41 = vld [vmem:[#allocation2 + $0x8] sm:$0xff]
    %v42 = vld [vmem:[#allocation5] sm:$0xff]
    %v43 = vld [vmem:[#allocation5 + $0x8] sm:$0xff]
    %v44 = vld [vmem:[#allocation5 + $0x10] sm:$0xff]
    %v45 = vld [vmem:[#allocation5 + $0x18] sm:$0xff]
    %vm46 = vcmask 261120
    %v48 = vsel %vm46, %v40, 0
    %v51 = vsel %vm46, %v41, 0
    %53 = vmatprep.subr.mxu0 0.0
    %54 = vmatpush1.msra.mxu0 %v42
    %55 = vmatprep.subr.mxu0 0.0
    %56 = vmatpush1.msra.mxu0 %v43
    %57 = vmatprep.subr.mxu0 0.0
    %58 = vmatpush1.msra.mxu0 %v44
    %59 = vmatprep.subr.mxu0 0.0
    %60 = vmatpush1.msra.mxu0 %v45
    %61 = vmatprep.subr.mxu0 0.0
    %62 = vmatpush1.msra.mxu0 0.0
    %63 = vmatprep.subr.mxu0 0.0
    %64 = vmatpush1.msra.mxu0 0.0
    %65 = vmatprep.subr.mxu0 0.0
    %66 = vmatpush1.msra.mxu0 0.0
    %67 = vmatprep.subr.mxu0 0.0
    %68 = vmatpush1.msra.mxu0 0.0
    %69 = vmatprep.subr.mxu0 0.0
    %70 = vmatpush1.msra.mxu0 0.0
    %71 = vmatprep.subr.mxu0 0.0
    %72 = vmatpush1.msra.mxu0 0.0
    %73 = vmatprep.subr.mxu0 0.0
    %74 = vmatpush1.msra.mxu0 0.0
    %75 = vmatprep.subr.mxu0 0.0
    %76 = vmatpush1.msra.mxu0 0.0
    %77 = vmatprep.subr.mxu0 0.0
    %78 = vmatpush1.msra.mxu0 0.0
    %79 = vmatprep.subr.mxu0 0.0
    %80 = vmatpush1.msra.mxu0 0.0
    %81 = vmatprep.subr.mxu0 0.0
    %82 = vmatpush1.msra.mxu0 0.0
    %83 = vmatprep.subr.mxu0 0.0
    %84 = vmatpush1.msra.mxu0 0.0
    %85 = vmatprep.subr.mxu0 0.0
    %86 = vmatpush1.msra.mxu0 0.0
    %87 = vmatprep.subr.mxu0 0.0
    %88 = vmatpush1.msra.mxu0 0.0
    %89 = vmatprep.subr.mxu0 0.0
    %90 = vmatpush1.msra.mxu0 0.0
    %91 = vmatprep.subr.mxu0 0.0
    %92 = vmatpush1.msra.mxu0 0.0
    %93 = vmatprep.subr.mxu0 0.0
    %94 = vmatpush1.msra.mxu0 0.0
    %95 = vmatprep.subr.mxu0 0.0
    %96 = vmatpush1.msra.mxu0 0.0
    %97 = vmatprep.subr.mxu0 0.0
    %98 = vmatpush1.msra.mxu0 0.0
    %99 = vmatprep.subr.mxu0 0.0
    %100 = vmatpush1.msra.mxu0 0.0
    %101 = vmatprep.subr.mxu0 0.0
    %102 = vmatpush1.msra.mxu0 0.0
    %103 = vmatprep.subr.mxu0 0.0
    %104 = vmatpush1.msra.mxu0 0.0
    %105 = vmatprep.subr.mxu0 0.0
    %106 = vmatpush1.msra.mxu0 0.0
    %107 = vmatprep.subr.mxu0 0.0
    %108 = vmatpush1.msra.mxu0 0.0
    %109 = vmatprep.subr.mxu0 0.0
    %110 = vmatpush1.msra.mxu0 0.0
    %111 = vmatprep.subr.mxu0 0.0
    %112 = vmatpush1.msra.mxu0 0.0
    %113 = vmatprep.subr.mxu0 0.0
    %114 = vmatpush1.msra.mxu0 0.0
    %115 = vmatprep.subr.mxu0 0.0
    %116 = vmatpush1.msra.mxu0 0.0
    %117 = vmatprep.mubr.f32.mxu0 0.0
    %118 = vmatmul.mubr.f32.gmra.mrb[0].mxu0 %v48
    %v119 = vpop.f32.mrb[0].mxu0
    %v120 = vadd.f32 0.0, %v119
    %v121 = vpop.f32.mrb[0].mxu0
    %122 = vmatprep.mubr.f32.mxu0 0.0
    %123 = vmatmul.mubr.f32.gmra.mrb[0].mxu0 %v51
    %v124 = vpop.f32.mrb[0].mxu0
    %v125 = vadd.f32 0.0, %v124
    %v126 = vpop.f32.mrb[0].mxu0
    %127 = vdwg.mxu0
    %128 = vst [vmem:[#allocation7] sm:$0xff] %v120
    %129 = vst [vmem:[#allocation7 + $0x8] sm:$0xff] %v125
    // Predicated region
    $region18: #{tpu_custom_call.1} parent=1 // pred_check
      _
    $region19: #{tpu_custom_call.1} parent=1 // pred_check_branch
      %131 = sbr.rel (0) target = $region21
    $region20: #{tpu_custom_call.1} parent=1 // pred_region
      %s133 = ssub.s32 256, 256
      %134 = vsyncadd [#allocation4], %s133
      %s135 = sshll.u32 [#allocation7], 4
      %s136 = int_to_ptr.vmem [resolvable:$true] %s135
      %141 = dma.vmem_to_hbm [thread:$0]  %s136, 256, %s2, [#allocation4], 128, 128, 8
    $region21: #{tpu_custom_call.1} parent=1 // pred_fallthru
      _
    // Predicated region
    $region22: #{tpu_custom_call.1} parent=1 // pred_check
      _
    $region23: #{tpu_custom_call.1} parent=1 // pred_check_branch
      %143 = sbr.rel (0) target = $region25
    $region24: #{tpu_custom_call.1} parent=1 // pred_region
      %144 = dma.done [#allocation4], 256
    $region25: #{tpu_custom_call.1} parent=1 // pred_fallthru
      _
    %145 = vsyncpa [#allocation3], 1
    %146 = vsyncpa [#allocation6], 1
    %147 = vsyncpa [#allocation4], 1

</llo_original>
